<compile_context>
chip_gen: v6e
topology: v6e:2x2x1
jax: 0.10.0
libtpu: 0.0.40
codegen_flags: <defaults>
</compile_context>

<pallas_src>
import functools

import jax
import jax.numpy as jnp
from jax.experimental import pallas as pl
from jax.experimental.pallas import tpu as pltpu


def _round_up(n, m):
    return ((n + m - 1) // m) * m


def _vmem_capacity_bytes():
    """Physical VMEM of the current generation (fallback: 64 MiB, v7x per-TC)."""
    try:
        cap = int(pltpu.get_tpu_info().vmem_capacity_bytes)
        return cap if cap > 0 else (64 << 20)
    except Exception:
        return 64 << 20


@functools.lru_cache(maxsize=None)
def _single_buffer_supported():
    """Probe once (constructor only, no kernel execution) whether
    BlockSpec(pipeline_mode=pl.Buffered(1)) is available on this jax."""
    if not hasattr(pl, "Buffered"):
        return False
    try:
        pl.BlockSpec((8, 128), lambda i: (0, 0),
                     pipeline_mode=pl.Buffered(buffer_count=1))
        return True
    except Exception:
        return False


# --------------------------------------------------------------------------
# Fused path: all (padded, bf16) weights resident in VMEM, grid over batch.
# --------------------------------------------------------------------------
def _fused_mlp_kernel(x_ref, *refs):
    """refs = (w0, b0, w1, b1, ..., wL, bL, out_ref)

    Layer 0:      h = tanh(x @ W0 + b0)   (dropout == identity in eval mode)
    Layers 1..L:  h = h @ Wl + bl         (no activation -- see module quirk)
    Weights are bf16 (in, out); biases f32 (1, out).  Matmuls use bf16
    operands with f32 accumulation; bias add / tanh stay in f32.
    """
    out_ref = refs[-1]
    param_refs = refs[:-1]
    n_linear = len(param_refs) // 2

    h = x_ref[...]
    for l in range(n_linear):
        w = param_refs[2 * l][...]        # bf16 (in_pad, out_pad)
        b = param_refs[2 * l + 1][...]    # f32  (1, out_pad)
        acc = jnp.dot(h.astype(jnp.bfloat16), w,
                      preferred_element_type=jnp.float32)
        acc = acc + b
        if l == 0:
            acc = jnp.tanh(acc)
            # TODO(synk): nn.Dropout in train mode would apply a random mask
            # here (pltpu.prng_random_bits); identity in eval mode.
        # Carry inter-layer activations in bf16 (halves VMEM/vreg traffic and
        # removes a per-dot cast stream); keep the last result f32 for store.
        h = acc.astype(jnp.bfloat16) if l < n_linear - 1 else acc
    out_ref[...] = h.astype(out_ref.dtype)


# --------------------------------------------------------------------------
# Streaming path: per-layer tiled matmul, weights streamed block-by-block.
# Used when the padded weights would not comfortably fit in VMEM (v7x 64 MiB).
# --------------------------------------------------------------------------
def _linear_kernel(x_ref, w_ref, b_ref, o_ref, acc_ref, *, apply_tanh):
    @pl.when(pl.program_id(2) == 0)
    def _():
        acc_ref[...] = jnp.zeros_like(acc_ref)

    acc_ref[...] += jnp.dot(x_ref[...].astype(jnp.bfloat16), w_ref[...],
                            preferred_element_type=jnp.float32)

    @pl.when(pl.program_id(2) == pl.num_programs(2) - 1)
    def _():
        r = acc_ref[...] + b_ref[...]
        if apply_tanh:
            r = jnp.tanh(r)
        o_ref[...] = r.astype(o_ref.dtype)


def _pick_feature_tile(dim):
    for t in (512, 256, 128):
        if dim % t == 0:
            return t
    return dim


def _streamed_linear(x_p, w_p, b_p, *, apply_tanh, out_dtype, tm):
    M, K = x_p.shape
    _, N = w_p.shape
    tk = _pick_feature_tile(K)
    tn = _pick_feature_tile(N)
    grid = (M // tm, N // tn, K // tk)
    return pl.pallas_call(
        functools.partial(_linear_kernel, apply_tanh=apply_tanh),
        out_shape=jax.ShapeDtypeStruct((M, N), out_dtype),
        grid_spec=pltpu.PrefetchScalarGridSpec(
            num_scalar_prefetch=0,
            grid=grid,
            in_specs=[pl.BlockSpec((tm, tk), lambda i, j, k: (i, k)),
                      pl.BlockSpec((tk, tn), lambda i, j, k: (k, j)),
                      pl.BlockSpec((1, tn), lambda i, j, k: (0, j))],
            out_specs=pl.BlockSpec((tm, tn), lambda i, j, k: (i, j)),
            scratch_shapes=[pltpu.VMEM((tm, tn), jnp.float32)],
        ),
        compiler_params=pltpu.CompilerParams(
            dimension_semantics=("parallel", "parallel", "arbitrary")),
    )(x_p, w_p, b_p)


# --------------------------------------------------------------------------
# Wrapper
# --------------------------------------------------------------------------
def mlp_forward(x, params, *, tb=None, out_dtype=None, lane=128,
                force_streaming=False):
    """Fused MLP forward pass.

    params: list of (W, b) with W shaped (in, out) float32 (transpose of
    nn.Linear's (out, in) weight) and b shaped (1, out) float32.
    Pass bf16 `x` / `out_dtype=jnp.bfloat16` if the surrounding graph already
    produces/consumes bf16 (halves x/out HBM bytes; biggest win on v5e).
    """
    B, in_features = x.shape
    out_features = params[-1][0].shape[1]
    out_dtype = x.dtype if out_dtype is None else out_dtype

    # ---- lane-pad every feature dim to a multiple of 128.  Exact: padded
    # input columns / weight rows+cols / bias cols are zero and tanh(0) == 0,
    # so padded lanes stay zero through every layer.
    # (If model dims are tunable, prefer real multiples of 256 for hidden/out
    #  on v6e/v7x -- their MXUs are 2x256^2; zero padding past 128 doesn't help.)
    in_pad = _round_up(in_features, lane)
    padded, flat_params = [], []
    prev = in_pad
    for w, b in params:
        fi, fo = w.shape
        fo_pad = _round_up(fo, lane)
        w_p = jnp.pad(w, ((0, prev - fi), (0, fo_pad - fo))).astype(jnp.bfloat16)
        b_p = jnp.pad(b, ((0, 0), (0, fo_pad - fo))).astype(jnp.float32)
        padded.append((w_p, b_p))
        flat_params += [w_p, b_p]
        prev = fo_pad
    out_pad = prev

    phys_vmem = _vmem_capacity_bytes()
    single_buf = _single_buffer_supported()
    weight_bytes = sum(w_p.size * 2 + b_p.size * 4 for w_p, b_p in padded)
    weight_vmem = weight_bytes * (1 if single_buf else 2)
    widest = max([in_pad] + [w_p.shape[1] for w_p, _ in padded])
    x_item = jnp.dtype(x.dtype).itemsize
    o_item = jnp.dtype(out_dtype).itemsize

    # ---- batch tiling: big tiles amortize the ~0.35us per-grid-step overhead
    # and per-step weight re-issue; rounded to 16 sublanes (bf16 packing).
    if tb is None:
        tb = min(_round_up(B, 16), 512)
        per_row = 2 * in_pad * x_item + 2 * out_pad * o_item + 6 * widest * 4
        budget = max(int(0.7 * phys_vmem) - weight_vmem, 1 << 20)
        cap = max(((budget // per_row) // 16) * 16, 16)
        tb = min(tb, cap)
        # Give megacore (v7x, 2 TCs) at least 2 grid steps when splittable;
        # costless on v5e/v6e (1 TC).
        if _round_up(B, tb) // tb < 2 and tb >= 32:
            tb = _round_up(tb // 2, 16)
    tb = max(_round_up(tb, 16), 16)
    B_pad = _round_up(B, tb)
    x_p = jnp.pad(x, ((0, B_pad - B), (0, in_pad - in_features)))

    use_streaming = force_streaming or weight_vmem > int(0.4 * phys_vmem)

    if use_streaming:
        # Weights too large to keep all layers VMEM-resident (hits v7x's
        # 64 MiB first): run layer-by-layer, streaming (tk, tn) weight blocks
        # through the grid pipeline; inter-layer activations stay bf16 in HBM.
        h = x_p
        n_linear = len(padded)
        for l, (w_p, b_p) in enumerate(padded):
            last = l == n_linear - 1
            h = _streamed_linear(h, w_p, b_p, apply_tanh=(l == 0),
                                 out_dtype=(out_dtype if last else jnp.bfloat16),
                                 tm=tb)
        return h[:B, :out_features]

    # ---- fused path: VMEM budget from the actual tile footprint, capped by
    # the generation's physical capacity (no fixed 48 MiB ceiling).
    est = (2 * tb * in_pad * x_item        # double-buffered input tile
           + 2 * tb * out_pad * o_item     # double-buffered output tile
           + weight_vmem                   # resident weights + biases
           + 6 * tb * widest * 4)          # in-kernel activation working set
    vmem_limit = int(min(max(2 * est, 8 << 20), int(0.85 * phys_vmem)))

    def _const_spec(shape):
        idx = lambda i: (0,) * len(shape)
        if single_buf:
            # Grid-invariant block: one VMEM buffer is enough.
            return pl.BlockSpec(shape, idx,
                                pipeline_mode=pl.Buffered(buffer_count=1))
        return pl.BlockSpec(shape, idx)

    in_specs = [pl.BlockSpec((tb, in_pad), lambda i: (i, 0))]
    for w_p, b_p in padded:
        in_specs.append(_const_spec(w_p.shape))
        in_specs.append(_const_spec(b_p.shape))
    out_specs = pl.BlockSpec((tb, out_pad), lambda i: (i, 0))

    out_full = pl.pallas_call(
        _fused_mlp_kernel,
        out_shape=jax.ShapeDtypeStruct((B_pad, out_pad), out_dtype),
        grid_spec=pltpu.PrefetchScalarGridSpec(
            num_scalar_prefetch=0,
            grid=(B_pad // tb,),
            in_specs=in_specs,
            out_specs=out_specs,
        ),
        compiler_params=pltpu.CompilerParams(
            dimension_semantics=("parallel",),
            vmem_limit_bytes=vmem_limit,
        ),
    )(x_p, *flat_params)

    return out_full[:B, :out_features]


# --------------------------------------------------------------------------
# Init + references
# --------------------------------------------------------------------------
def init_linear(key, fan_in, fan_out):
    """Deterministic nn.Linear-style init: U(-1/sqrt(fan_in), 1/sqrt(fan_in))."""
    kw, kb = jax.random.split(key)
    bound = 1.0 / jnp.sqrt(fan_in)
    w = jax.random.uniform(kw, (fan_in, fan_out), jnp.float32, -bound, bound)
    b = jax.random.uniform(kb, (1, fan_out), jnp.float32, -bound, bound)
    return w, b


def reference_forward(x, params):
    """Pure-f32 reference matching the PyTorch module (eval mode)."""
    w0, b0 = params[0]
    h = jnp.tanh(x @ w0 + b0)
    for w, b in params[1:]:
        h = h @ w + b
    return h


def reference_forward_bf16(x, params):
    """Reference mirroring kernel numerics: bf16 matmul operands, f32
    accumulation, f32 bias add / tanh, bf16 inter-layer activations."""
    h = x
    n = len(params)
    for l, (w, b) in enumerate(params):
        acc = jnp.dot(h.astype(jnp.bfloat16), w.astype(jnp.bfloat16),
                      preferred_element_type=jnp.float32) + b
        if l == 0:
            acc = jnp.tanh(acc)
        h = acc.astype(jnp.bfloat16) if l < n - 1 else acc
    return h


if __name__ == "__main__":
    input_features = 16
    hidden_sizes = 32
    nr_layers = 3
    output_features = 4
    batch = 16

    key = jax.random.PRNGKey(0)
    kx, *kls = jax.random.split(key, nr_layers + 2)

    # Layer stack: (in->hidden), (nr_layers-1) x (hidden->hidden), (hidden->out)
    dims = [(input_features, hidden_sizes)]
    dims += [(hidden_sizes, hidden_sizes)] * (nr_layers - 1)
    dims += [(hidden_sizes, output_features)]
    params = [init_linear(k, fi, fo) for k, (fi, fo) in zip(kls, dims)]

    x = jax.random.normal(kx, (batch, input_features), jnp.float32)

    # Fused (all-weights-resident) path.
    out = jax.block_until_ready(mlp_forward(x, params))
    assert out.shape == (batch, output_features)
    ref_bf16 = reference_forward_bf16(x, params)
    ref_f32 = reference_forward(x, params)
    assert jnp.allclose(out, ref_bf16, atol=1e-3, rtol=1e-3), "mismatch vs bf16 ref"
    assert jnp.allclose(out, ref_f32, atol=2e-2, rtol=2e-2), "mismatch vs f32 ref"

    # Non-divisible batch (wrapper pads and slices back).
    x_odd = jax.random.normal(kx, (13, input_features), jnp.float32)
    out_odd = jax.block_until_ready(mlp_forward(x_odd, params))
    assert out_odd.shape == (13, output_features)
    assert jnp.allclose(out_odd, reference_forward_bf16(x_odd, params),
                        atol=1e-3, rtol=1e-3), "mismatch on odd batch"

    # Weight-streaming path (forced; normally triggers only for large models).
    out_s = jax.block_until_ready(mlp_forward(x, params, force_streaming=True))
    assert out_s.shape == (batch, output_features)
    assert jnp.allclose(out_s, ref_bf16, atol=1e-3, rtol=1e-3), "mismatch (streaming)"

    print("KERNEL_OK")
</pallas_src>

<mosaic_0001>
module attributes {stable_mosaic.version = 11 : i64} {
  func.func @_fused_mlp_kernel(%arg0: i32, %arg1: memref<16x128xf32, #tpu.memory_space<vmem>>, %arg2: memref<128x128xbf16, #tpu.memory_space<vmem>>, %arg3: memref<1x128xf32, #tpu.memory_space<vmem>>, %arg4: memref<128x128xbf16, #tpu.memory_space<vmem>>, %arg5: memref<1x128xf32, #tpu.memory_space<vmem>>, %arg6: memref<128x128xbf16, #tpu.memory_space<vmem>>, %arg7: memref<1x128xf32, #tpu.memory_space<vmem>>, %arg8: memref<128x128xbf16, #tpu.memory_space<vmem>>, %arg9: memref<1x128xf32, #tpu.memory_space<vmem>>, %arg10: memref<16x128xf32, #tpu.memory_space<vmem>>) attributes {dimension_semantics = [#tpu.dimension_semantics<parallel>], iteration_bounds = array<i64: 1>, scalar_prefetch = 0 : i64, scratch_operands = 0 : i64, tpu.core_type = #tpu.core_type<tc>, window_params = [{transform_indices = @transform_0, window_bounds = array<i64: 16, 128>}, {pipeline_mode = #tpu.pipeline_mode<synchronous>, transform_indices = @transform_1, window_bounds = array<i64: 128, 128>}, {pipeline_mode = #tpu.pipeline_mode<synchronous>, transform_indices = @transform_2, window_bounds = array<i64: 1, 128>}, {pipeline_mode = #tpu.pipeline_mode<synchronous>, transform_indices = @transform_3, window_bounds = array<i64: 128, 128>}, {pipeline_mode = #tpu.pipeline_mode<synchronous>, transform_indices = @transform_4, window_bounds = array<i64: 1, 128>}, {pipeline_mode = #tpu.pipeline_mode<synchronous>, transform_indices = @transform_5, window_bounds = array<i64: 128, 128>}, {pipeline_mode = #tpu.pipeline_mode<synchronous>, transform_indices = @transform_6, window_bounds = array<i64: 1, 128>}, {pipeline_mode = #tpu.pipeline_mode<synchronous>, transform_indices = @transform_7, window_bounds = array<i64: 128, 128>}, {pipeline_mode = #tpu.pipeline_mode<synchronous>, transform_indices = @transform_8, window_bounds = array<i64: 1, 128>}, {transform_indices = @transform_9, window_bounds = array<i64: 16, 128>}]} {
    %c0 = arith.constant 0 : index
    %c0_0 = arith.constant 0 : index
    %0 = vector.load %arg1[%c0, %c0_0] : memref<16x128xf32, #tpu.memory_space<vmem>>, vector<16x128xf32>
    %c0_1 = arith.constant 0 : index
    %c0_2 = arith.constant 0 : index
    %1 = vector.load %arg2[%c0_1, %c0_2] : memref<128x128xbf16, #tpu.memory_space<vmem>>, vector<128x128xbf16>
    %c0_3 = arith.constant 0 : index
    %c0_4 = arith.constant 0 : index
    %2 = vector.load %arg3[%c0_3, %c0_4] : memref<1x128xf32, #tpu.memory_space<vmem>>, vector<1x128xf32>
    %3 = arith.truncf %0 : vector<16x128xf32> to vector<16x128xbf16>
    %cst = arith.constant dense<0.000000e+00> : vector<16x128xf32>
    %4 = tpu.matmul %3, %1, %cst {dimension_numbers = #tpu.dot_dimension_numbers<[1], [0], [0], [1], [0, 0, 1, 1], [], []>} : vector<16x128xbf16>, vector<128x128xbf16>, vector<16x128xf32> -> vector<16x128xf32>
    %5 = vector.broadcast %2 : vector<1x128xf32> to vector<16x128xf32>
    %6 = arith.addf %4, %5 : vector<16x128xf32>
    %7 = math.tanh %6 : vector<16x128xf32>
    %8 = arith.truncf %7 : vector<16x128xf32> to vector<16x128xbf16>
    %c0_5 = arith.constant 0 : index
    %c0_6 = arith.constant 0 : index
    %9 = vector.load %arg4[%c0_5, %c0_6] : memref<128x128xbf16, #tpu.memory_space<vmem>>, vector<128x128xbf16>
    %c0_7 = arith.constant 0 : index
    %c0_8 = arith.constant 0 : index
    %10 = vector.load %arg5[%c0_7, %c0_8] : memref<1x128xf32, #tpu.memory_space<vmem>>, vector<1x128xf32>
    %cst_9 = arith.constant dense<0.000000e+00> : vector<16x128xf32>
    %11 = tpu.matmul %8, %9, %cst_9 {dimension_numbers = #tpu.dot_dimension_numbers<[1], [0], [0], [1], [0, 0, 1, 1], [], []>} : vector<16x128xbf16>, vector<128x128xbf16>, vector<16x128xf32> -> vector<16x128xf32>
    %12 = vector.broadcast %10 : vector<1x128xf32> to vector<16x128xf32>
    %13 = arith.addf %11, %12 : vector<16x128xf32>
    %14 = arith.truncf %13 : vector<16x128xf32> to vector<16x128xbf16>
    %c0_10 = arith.constant 0 : index
    %c0_11 = arith.constant 0 : index
    %15 = vector.load %arg6[%c0_10, %c0_11] : memref<128x128xbf16, #tpu.memory_space<vmem>>, vector<128x128xbf16>
    %c0_12 = arith.constant 0 : index
    %c0_13 = arith.constant 0 : index
    %16 = vector.load %arg7[%c0_12, %c0_13] : memref<1x128xf32, #tpu.memory_space<vmem>>, vector<1x128xf32>
    %cst_14 = arith.constant dense<0.000000e+00> : vector<16x128xf32>
    %17 = tpu.matmul %14, %15, %cst_14 {dimension_numbers = #tpu.dot_dimension_numbers<[1], [0], [0], [1], [0, 0, 1, 1], [], []>} : vector<16x128xbf16>, vector<128x128xbf16>, vector<16x128xf32> -> vector<16x128xf32>
    %18 = vector.broadcast %16 : vector<1x128xf32> to vector<16x128xf32>
    %19 = arith.addf %17, %18 : vector<16x128xf32>
    %20 = arith.truncf %19 : vector<16x128xf32> to vector<16x128xbf16>
    %c0_15 = arith.constant 0 : index
    %c0_16 = arith.constant 0 : index
    %21 = vector.load %arg8[%c0_15, %c0_16] : memref<128x128xbf16, #tpu.memory_space<vmem>>, vector<128x128xbf16>
    %c0_17 = arith.constant 0 : index
    %c0_18 = arith.constant 0 : index
    %22 = vector.load %arg9[%c0_17, %c0_18] : memref<1x128xf32, #tpu.memory_space<vmem>>, vector<1x128xf32>
    %cst_19 = arith.constant dense<0.000000e+00> : vector<16x128xf32>
    %23 = tpu.matmul %20, %21, %cst_19 {dimension_numbers = #tpu.dot_dimension_numbers<[1], [0], [0], [1], [0, 0, 1, 1], [], []>} : vector<16x128xbf16>, vector<128x128xbf16>, vector<16x128xf32> -> vector<16x128xf32>
    %24 = vector.broadcast %22 : vector<1x128xf32> to vector<16x128xf32>
    %25 = arith.addf %23, %24 : vector<16x128xf32>
    %c0_20 = arith.constant 0 : index
    %c0_21 = arith.constant 0 : index
    %26 = vector.load %arg10[%c0_20, %c0_21] : memref<16x128xf32, #tpu.memory_space<vmem>>, vector<16x128xf32>
    tpu.vector_store %arg10[%c0_20, %c0_21], %25 {strides = array<i32>} : memref<16x128xf32, #tpu.memory_space<vmem>>, vector<16x128xf32>,
    return
  }
  func.func @transform_0(%arg0: i32) -> (i32, i32) {
    %c0_i32 = arith.constant 0 : i32
    %c0_i32_0 = arith.constant 0 : i32
    return %arg0, %c0_i32 : i32, i32
  }
  func.func @transform_1(%arg0: i32) -> (i32, i32) {
    %c0_i32 = arith.constant 0 : i32
    %c0_i32_0 = arith.constant 0 : i32
    %c0_i32_1 = arith.constant 0 : i32
    return %c0_i32, %c0_i32_0 : i32, i32
  }
  func.func @transform_2(%arg0: i32) -> (i32, i32) {
    %c0_i32 = arith.constant 0 : i32
    %c0_i32_0 = arith.constant 0 : i32
    %c0_i32_1 = arith.constant 0 : i32
    return %c0_i32, %c0_i32_0 : i32, i32
  }
  func.func @transform_3(%arg0: i32) -> (i32, i32) {
    %c0_i32 = arith.constant 0 : i32
    %c0_i32_0 = arith.constant 0 : i32
    %c0_i32_1 = arith.constant 0 : i32
    return %c0_i32, %c0_i32_0 : i32, i32
  }
  func.func @transform_4(%arg0: i32) -> (i32, i32) {
    %c0_i32 = arith.constant 0 : i32
    %c0_i32_0 = arith.constant 0 : i32
    %c0_i32_1 = arith.constant 0 : i32
    return %c0_i32, %c0_i32_0 : i32, i32
  }
  func.func @transform_5(%arg0: i32) -> (i32, i32) {
    %c0_i32 = arith.constant 0 : i32
    %c0_i32_0 = arith.constant 0 : i32
    %c0_i32_1 = arith.constant 0 : i32
    return %c0_i32, %c0_i32_0 : i32, i32
  }
  func.func @transform_6(%arg0: i32) -> (i32, i32) {
    %c0_i32 = arith.constant 0 : i32
    %c0_i32_0 = arith.constant 0 : i32
    %c0_i32_1 = arith.constant 0 : i32
    return %c0_i32, %c0_i32_0 : i32, i32
  }
  func.func @transform_7(%arg0: i32) -> (i32, i32) {
    %c0_i32 = arith.constant 0 : i32
    %c0_i32_0 = arith.constant 0 : i32
    %c0_i32_1 = arith.constant 0 : i32
    return %c0_i32, %c0_i32_0 : i32, i32
  }
  func.func @transform_8(%arg0: i32) -> (i32, i32) {
    %c0_i32 = arith.constant 0 : i32
    %c0_i32_0 = arith.constant 0 : i32
    %c0_i32_1 = arith.constant 0 : i32
    return %c0_i32, %c0_i32_0 : i32, i32
  }
  func.func @transform_9(%arg0: i32) -> (i32, i32) {
    %c0_i32 = arith.constant 0 : i32
    %c0_i32_0 = arith.constant 0 : i32
    return %arg0, %c0_i32 : i32, i32
  }
}

</mosaic_0001>

<llo_original>
// kernel: tpu_custom_call.1
$region0: #{tpu_custom_call.1}
  #allocation0 [shape = 'u32[]', space=smem, size = 0x4, offset = 0x4, fixed_abs, tag = 'smem constant byte address 0x4 - core index']
  #allocation1 [shape = 'u32[144,128]{1,0:T(1,128)}', space=vmem, size = 0x12000, scoped, tag = 'internal scratch']
  %s0 = inlined_call_operand.hbm [shape: f32[16,128], index: 0, kind: input, shape index: {}]
  %s1 = inlined_call_operand.hbm [shape: bf16[128,128], index: 1, kind: input, shape index: {}]
  %s2 = inlined_call_operand.vmem [shape: f32[1,128], index: 2, kind: input, shape index: {}]
  %s3 = inlined_call_operand.hbm [shape: bf16[128,128], index: 3, kind: input, shape index: {}]
  %s4 = inlined_call_operand.vmem [shape: f32[1,128], index: 4, kind: input, shape index: {}]
  %s5 = inlined_call_operand.hbm [shape: bf16[128,128], index: 5, kind: input, shape index: {}]
  %s6 = inlined_call_operand.vmem [shape: f32[1,128], index: 6, kind: input, shape index: {}]
  %s7 = inlined_call_operand.hbm [shape: bf16[128,128], index: 7, kind: input, shape index: {}]
  %s8 = inlined_call_operand.vmem [shape: f32[1,128], index: 8, kind: input, shape index: {}]
  %s9 = inlined_call_operand.hbm [shape: f32[16,128], index: 9, kind: output, shape index: {}]
  %s10 = sld [smem:[#allocation0]]
  $region66: #{tpu_custom_call.1} parent=0
    _
  %s12 = ssub.s32 1, %s10
  %s13 = scalar_select 0, %s12, %s10
  $region1: #{tpu_custom_call.1} parent=0
    #allocation2 [shape = 'u8[8192]{0}', space=vmem, size = 0x2000, scoped, tag = 'input window, operand 0, single buffered']
    #allocation3 [shape = 's32[1]{0}', space=sflag, size = 0x4, scoped, tag = 'scoped memory for tpu_custom_call.1']
    #allocation4 [shape = 's32[1]{0}', space=sflag, size = 0x4, scoped, tag = 'scoped memory for tpu_custom_call.1']
    #allocation5 [shape = 'u8[32768]{0}', space=vmem, size = 0x8000, scoped, tag = 'input window, operand 1, single buffered']
    #allocation6 [shape = 's32[1]{0}', space=sflag, size = 0x4, scoped, tag = 'scoped memory for tpu_custom_call.1']
    #allocation7 [shape = 'u8[32768]{0}', space=vmem, size = 0x8000, scoped, tag = 'input window, operand 3, single buffered']
    #allocation8 [shape = 'u8[32768]{0}', space=vmem, size = 0x8000, scoped, tag = 'input window, operand 5, single buffered']
    #allocation9 [shape = 's32[1]{0}', space=sflag, size = 0x4, scoped, tag = 'scoped memory for tpu_custom_call.1']
    #allocation10 [shape = 'u8[32768]{0}', space=vmem, size = 0x8000, scoped, tag = 'input window, operand 7, single buffered']
    #allocation11 [shape = 'u8[8192]{0}', space=vmem, size = 0x2000, scoped, tag = 'output window, operand 0, single buffered']
    %14 = vsyncpa [#allocation3], 0
    %15 = vsyncpa [#allocation6], 0
    %16 = vsyncpa [#allocation9], 0
    %17 = vsyncpa [#allocation4], 0
    // Predicated region
    $region2: #{tpu_custom_call.1} parent=1 // pred_check
      _
    $region3: #{tpu_custom_call.1} parent=1 // pred_check_branch
      %19 = sbr.rel (0) target = $region5
    $region4: #{tpu_custom_call.1} parent=1 // pred_region
      %s21 = ssub.s32 256, 256
      %22 = vsyncadd [#allocation3], %s21
      %s23 = sshll.u32 [#allocation2], 4
      %s24 = int_to_ptr.vmem [resolvable:$true] %s23
      %29 = dma.hbm_to_vmem [thread:$0]  %s0, 256, %s24, [#allocation3], 128, 128, 8
    $region5: #{tpu_custom_call.1} parent=1 // pred_fallthru
      _
    // Predicated region
    $region6: #{tpu_custom_call.1} parent=1 // pred_check
      _
    $region7: #{tpu_custom_call.1} parent=1 // pred_check_branch
      %31 = sbr.rel (0) target = $region9
    $region8: #{tpu_custom_call.1} parent=1 // pred_region
      %s33 = ssub.s32 1024, 1024
      %34 = vsyncadd [#allocation6], %s33
      %s35 = sshll.u32 [#allocation5], 4
      %s36 = int_to_ptr.vmem [resolvable:$true] %s35
      %41 = dma.hbm_to_vmem [thread:$0]  %s1, 1024, %s36, [#allocation6], 64, 64, 4
    $region9: #{tpu_custom_call.1} parent=1 // pred_fallthru
      _
    // Predicated region
    $region10: #{tpu_custom_call.1} parent=1 // pred_check
      _
    $region11: #{tpu_custom_call.1} parent=1 // pred_check_branch
      %43 = sbr.rel (0) target = $region13
    $region12: #{tpu_custom_call.1} parent=1 // pred_region
      _
    $region13: #{tpu_custom_call.1} parent=1 // pred_fallthru
      _
    // Predicated region
    $region14: #{tpu_custom_call.1} parent=1 // pred_check
      _
    $region15: #{tpu_custom_call.1} parent=1 // pred_check_branch
      %45 = sbr.rel (0) target = $region17
    $region16: #{tpu_custom_call.1} parent=1 // pred_region
      %s47 = ssub.s32 1024, 1024
      %48 = vsyncadd [#allocation6], %s47
      %s49 = sshll.u32 [#allocation7], 4
      %s50 = int_to_ptr.vmem [resolvable:$true] %s49
      %55 = dma.hbm_to_vmem [thread:$0]  %s3, 1024, %s50, [#allocation6], 64, 64, 4
    $region17: #{tpu_custom_call.1} parent=1 // pred_fallthru
      _
    // Predicated region
    $region18: #{tpu_custom_call.1} parent=1 // pred_check
      _
    $region19: #{tpu_custom_call.1} parent=1 // pred_check_branch
      %57 = sbr.rel (0) target = $region21
    $region20: #{tpu_custom_call.1} parent=1 // pred_region
      _
    $region21: #{tpu_custom_call.1} parent=1 // pred_fallthru
      _
    // Predicated region
    $region22: #{tpu_custom_call.1} parent=1 // pred_check
      _
    $region23: #{tpu_custom_call.1} parent=1 // pred_check_branch
      %59 = sbr.rel (0) target = $region25
    $region24: #{tpu_custom_call.1} parent=1 // pred_region
      %s61 = ssub.s32 1024, 1024
      %62 = vsyncadd [#allocation9], %s61
      %s63 = sshll.u32 [#allocation8], 4
      %s64 = int_to_ptr.vmem [resolvable:$true] %s63
      %69 = dma.hbm_to_vmem [thread:$0]  %s5, 1024, %s64, [#allocation9], 64, 64, 4
    $region25: #{tpu_custom_call.1} parent=1 // pred_fallthru
      _
    // Predicated region
    $region26: #{tpu_custom_call.1} parent=1 // pred_check
      _
    $region27: #{tpu_custom_call.1} parent=1 // pred_check_branch
      %71 = sbr.rel (0) target = $region29
    $region28: #{tpu_custom_call.1} parent=1 // pred_region
      _
    $region29: #{tpu_custom_call.1} parent=1 // pred_fallthru
      _
    // Predicated region
    $region30: #{tpu_custom_call.1} parent=1 // pred_check
      _
    $region31: #{tpu_custom_call.1} parent=1 // pred_check_branch
      %73 = sbr.rel (0) target = $region33
    $region32: #{tpu_custom_call.1} parent=1 // pred_region
      %s75 = ssub.s32 1024, 1024
      %76 = vsyncadd [#allocation9], %s75
      %s77 = sshll.u32 [#allocation10], 4
      %s78 = int_to_ptr.vmem [resolvable:$true] %s77
      %83 = dma.hbm_to_vmem [thread:$0]  %s7, 1024, %s78, [#allocation9], 64, 64, 4
    $region33: #{tpu_custom_call.1} parent=1 // pred_fallthru
      _
    // Predicated region
    $region34: #{tpu_custom_call.1} parent=1 // pred_check
      _
    $region35: #{tpu_custom_call.1} parent=1 // pred_check_branch
      %85 = sbr.rel (0) target = $region37
    $region36: #{tpu_custom_call.1} parent=1 // pred_region
      _
    $region37: #{tpu_custom_call.1} parent=1 // pred_fallthru
      _
    // Predicated region
    $region38: #{tpu_custom_call.1} parent=1 // pred_check
      _
    $region39: #{tpu_custom_call.1} parent=1 // pred_check_branch
      %87 = sbr.rel (0) target = $region41
    $region40: #{tpu_custom_call.1} parent=1 // pred_region
      %88 = dma.done [#allocation3], 256
    $region41: #{tpu_custom_call.1} parent=1 // pred_fallthru
      _
    // Predicated region
    $region42: #{tpu_custom_call.1} parent=1 // pred_check
      _
    $region43: #{tpu_custom_call.1} parent=1 // pred_check_branch
      %90 = sbr.rel (0) target = $region45
    $region44: #{tpu_custom_call.1} parent=1 // pred_region
      %91 = dma.done [#allocation6], 1024
    $region45: #{tpu_custom_call.1} parent=1 // pred_fallthru
      _
    // Predicated region
    $region46: #{tpu_custom_call.1} parent=1 // pred_check
      _
    $region47: #{tpu_custom_call.1} parent=1 // pred_check_branch
      %93 = sbr.rel (0) target = $region49
    $region48: #{tpu_custom_call.1} parent=1 // pred_region
      %94 = dma.done [#allocation6], 1024
    $region49: #{tpu_custom_call.1} parent=1 // pred_fallthru
      _
    // Predicated region
    $region50: #{tpu_custom_call.1} parent=1 // pred_check
      _
    $region51: #{tpu_custom_call.1} parent=1 // pred_check_branch
      %96 = sbr.rel (0) target = $region53
    $region52: #{tpu_custom_call.1} parent=1 // pred_region
      %97 = dma.done [#allocation9], 1024
    $region53: #{tpu_custom_call.1} parent=1 // pred_fallthru
      _
    // Predicated region
    $region54: #{tpu_custom_call.1} parent=1 // pred_check
      _
    $region55: #{tpu_custom_call.1} parent=1 // pred_check_branch
      %99 = sbr.rel (0) target = $region57
    $region56: #{tpu_custom_call.1} parent=1 // pred_region
      %100 = dma.done [#allocation9], 1024
    $region57: #{tpu_custom_call.1} parent=1 // pred_fallthru
      _
    %v102 = vld [vmem:[#allocation2] sm:$0xff]
    %v103 = vld [vmem:[#allocation2 + $0x8] sm:$0xff]
    %v104 = vld [vmem:[#allocation5] sm:$0xf]
    %v105 = vld [vmem:[#allocation5 + $0x4] sm:$0xf]
    %v106 = vld [vmem:[#allocation5 + $0x8] sm:$0xf]
    %v107 = vld [vmem:[#allocation5 + $0xc] sm:$0xf]
    %v108 = vld [vmem:[#allocation5 + $0x10] sm:$0xf]
    %v109 = vld [vmem:[#allocation5 + $0x14] sm:$0xf]
    %v110 = vld [vmem:[#allocation5 + $0x18] sm:$0xf]
    %v111 = vld [vmem:[#allocation5 + $0x1c] sm:$0xf]
    %v112 = vld [vmem:[#allocation5 + $0x20] sm:$0xf]
    %v113 = vld [vmem:[#allocation5 + $0x24] sm:$0xf]
    %v114 = vld [vmem:[#allocation5 + $0x28] sm:$0xf]
    %v115 = vld [vmem:[#allocation5 + $0x2c] sm:$0xf]
    %v116 = vld [vmem:[#allocation5 + $0x30] sm:$0xf]
    %v117 = vld [vmem:[#allocation5 + $0x34] sm:$0xf]
    %v118 = vld [vmem:[#allocation5 + $0x38] sm:$0xf]
    %v119 = vld [vmem:[#allocation5 + $0x3c] sm:$0xf]
    %v120 = vld [vmem:[%s2] sm:$0x1]
    %v121 = vpack.c.bf16 %v103, %v102
    %v123 = vlaneseq
    %v124 = vshrl.u32 %v123, 7
    %v125 = vsub.s32 0, %v124
    %v126 = vrot.slane %v120, %v125
    %v144 = vunpack.c.l.b16 %v104
    %v145 = vunpack.c.l.b16 %v105
    %v146 = vunpack.c.l.b16 %v106
    %v147 = vunpack.c.l.b16 %v107
    %v148 = vunpack.c.l.b16 %v108
    %v149 = vunpack.c.l.b16 %v109
    %v150 = vunpack.c.l.b16 %v110
    %v151 = vunpack.c.l.b16 %v111
    %v152 = vunpack.c.l.b16 %v112
    %v153 = vunpack.c.l.b16 %v113
    %v154 = vunpack.c.l.b16 %v114
    %v155 = vunpack.c.l.b16 %v115
    %v156 = vunpack.c.l.b16 %v116
    %v157 = vunpack.c.l.b16 %v117
    %v158 = vunpack.c.l.b16 %v118
    %v159 = vunpack.c.l.b16 %v119
    %v160 = vpack.c.b16 %v145, %v144
    %v161 = vpack.c.b16 %v147, %v146
    %v162 = vpack.c.b16 %v149, %v148
    %v163 = vpack.c.b16 %v151, %v150
    %v164 = vpack.c.b16 %v153, %v152
    %v165 = vpack.c.b16 %v155, %v154
    %v166 = vpack.c.b16 %v157, %v156
    %v167 = vpack.c.b16 %v159, %v158
    %176 = vmatprep.subr.bf16.mxu0 0
    %177 = vmatpush1.bf16.msra.mxu0 %v167
    %178 = vmatprep.subr.bf16.mxu0 0
    %179 = vmatpush1.bf16.msra.mxu0 %v166
    %180 = vmatprep.subr.bf16.mxu0 0
    %181 = vmatpush1.bf16.msra.mxu0 %v165
    %182 = vmatprep.subr.bf16.mxu0 0
    %183 = vmatpush1.bf16.msra.mxu0 %v164
    %184 = vmatprep.subr.bf16.mxu0 0
    %185 = vmatpush1.bf16.msra.mxu0 %v163
    %186 = vmatprep.subr.bf16.mxu0 0
    %187 = vmatpush1.bf16.msra.mxu0 %v162
    %188 = vmatprep.subr.bf16.mxu0 0
    %189 = vmatpush1.bf16.msra.mxu0 %v161
    %190 = vmatprep.subr.bf16.mxu0 0
    %191 = vmatpush1.bf16.msra.mxu0 %v160
    %192 = vmatprep.subr.bf16.mxu0 0
    %193 = vmatpush2.bf16.msra.mxu0 0
    %194 = vmatprep.subr.bf16.mxu0 0
    %195 = vmatpush2.bf16.msra.mxu0 0
    %196 = vmatprep.subr.bf16.mxu0 0
    %197 = vmatpush2.bf16.msra.mxu0 0
    %198 = vmatprep.subr.bf16.mxu0 0
    %199 = vmatpush2.bf16.msra.mxu0 0
    %200 = vmatprep.subr.bf16.mxu0 0
    %201 = vmatpush2.bf16.msra.mxu0 0
    %202 = vmatprep.subr.bf16.mxu0 0
    %203 = vmatpush2.bf16.msra.mxu0 0
    %204 = vmatprep.subr.bf16.mxu0 0
    %205 = vmatpush2.bf16.msra.mxu0 0
    %206 = vmatprep.subr.bf16.mxu0 0
    %207 = vmatpush2.bf16.msra.mxu0 0
    %208 = vmatprep.mubr.bf16.mxu0 0
    %209 = vmatmul.mubr.bf16.gmra.mxu0 %v121
    %v210 = vpop.f32.mrf.mxu0
    %v211 = vadd.f32 %v126, %v210
    %v212 = vpop.f32.mrf.mxu0
    %v213 = vpop.f32.mrf.mxu0
    %v214 = vadd.f32 %v126, %v213
    %v215 = vpop.f32.mrf.mxu0
    %216 = vdwg.mxu0
    %v217 = vtanh.pop %v211
    %v218 = vtanh.pop %v214
    %v219 = vpack.c.bf16 %v218, %v217
    %v220 = vld [vmem:[#allocation7] sm:$0xf]
    %v221 = vld [vmem:[#allocation7 + $0x4] sm:$0xf]
    %v222 = vld [vmem:[#allocation7 + $0x8] sm:$0xf]
    %v223 = vld [vmem:[#allocation7 + $0xc] sm:$0xf]
    %v224 = vld [vmem:[#allocation7 + $0x10] sm:$0xf]
    %v225 = vld [vmem:[#allocation7 + $0x14] sm:$0xf]
    %v226 = vld [vmem:[#allocation7 + $0x18] sm:$0xf]
    %v227 = vld [vmem:[#allocation7 + $0x1c] sm:$0xf]
    %v228 = vld [vmem:[#allocation7 + $0x20] sm:$0xf]
    %v229 = vld [vmem:[#allocation7 + $0x24] sm:$0xf]
    %v230 = vld [vmem:[#allocation7 + $0x28] sm:$0xf]
    %v231 = vld [vmem:[#allocation7 + $0x2c] sm:$0xf]
    %v232 = vld [vmem:[#allocation7 + $0x30] sm:$0xf]
    %v233 = vld [vmem:[#allocation7 + $0x34] sm:$0xf]
    %v234 = vld [vmem:[#allocation7 + $0x38] sm:$0xf]
    %v235 = vld [vmem:[#allocation7 + $0x3c] sm:$0xf]
    %v236 = vld [vmem:[%s4] sm:$0x1]
    %v238 = vlaneseq
    %v239 = vshrl.u32 %v238, 7
    %v240 = vsub.s32 0, %v239
    %v241 = vrot.slane %v236, %v240
    %v259 = vunpack.c.l.b16 %v220
    %v260 = vunpack.c.l.b16 %v221
    %v261 = vunpack.c.l.b16 %v222
    %v262 = vunpack.c.l.b16 %v223
    %v263 = vunpack.c.l.b16 %v224
    %v264 = vunpack.c.l.b16 %v225
    %v265 = vunpack.c.l.b16 %v226
    %v266 = vunpack.c.l.b16 %v227
    %v267 = vunpack.c.l.b16 %v228
    %v268 = vunpack.c.l.b16 %v229
    %v269 = vunpack.c.l.b16 %v230
    %v270 = vunpack.c.l.b16 %v231
    %v271 = vunpack.c.l.b16 %v232
    %v272 = vunpack.c.l.b16 %v233
    %v273 = vunpack.c.l.b16 %v234
    %v274 = vunpack.c.l.b16 %v235
    %v275 = vpack.c.b16 %v260, %v259
    %v276 = vpack.c.b16 %v262, %v261
    %v277 = vpack.c.b16 %v264, %v263
    %v278 = vpack.c.b16 %v266, %v265
    %v279 = vpack.c.b16 %v268, %v267
    %v280 = vpack.c.b16 %v270, %v269
    %v281 = vpack.c.b16 %v272, %v271
    %v282 = vpack.c.b16 %v274, %v273
    %291 = vmatprep.subr.bf16.mxu0 0
    %292 = vmatpush1.bf16.msra.mxu0 %v282
    %293 = vmatprep.subr.bf16.mxu0 0
    %294 = vmatpush1.bf16.msra.mxu0 %v281
    %295 = vmatprep.subr.bf16.mxu0 0
    %296 = vmatpush1.bf16.msra.mxu0 %v280
    %297 = vmatprep.subr.bf16.mxu0 0
    %298 = vmatpush1.bf16.msra.mxu0 %v279
    %299 = vmatprep.subr.bf16.mxu0 0
    %300 = vmatpush1.bf16.msra.mxu0 %v278
    %301 = vmatprep.subr.bf16.mxu0 0
    %302 = vmatpush1.bf16.msra.mxu0 %v277
    %303 = vmatprep.subr.bf16.mxu0 0
    %304 = vmatpush1.bf16.msra.mxu0 %v276
    %305 = vmatprep.subr.bf16.mxu0 0
    %306 = vmatpush1.bf16.msra.mxu0 %v275
    %307 = vmatprep.subr.bf16.mxu0 0
    %308 = vmatpush2.bf16.msra.mxu0 0
    %309 = vmatprep.subr.bf16.mxu0 0
    %310 = vmatpush2.bf16.msra.mxu0 0
    %311 = vmatprep.subr.bf16.mxu0 0
    %312 = vmatpush2.bf16.msra.mxu0 0
    %313 = vmatprep.subr.bf16.mxu0 0
    %314 = vmatpush2.bf16.msra.mxu0 0
    %315 = vmatprep.subr.bf16.mxu0 0
    %316 = vmatpush2.bf16.msra.mxu0 0
    %317 = vmatprep.subr.bf16.mxu0 0
    %318 = vmatpush2.bf16.msra.mxu0 0
    %319 = vmatprep.subr.bf16.mxu0 0
    %320 = vmatpush2.bf16.msra.mxu0 0
    %321 = vmatprep.subr.bf16.mxu0 0
    %322 = vmatpush2.bf16.msra.mxu0 0
    %323 = vmatprep.mubr.bf16.mxu0 0
    %324 = vmatmul.mubr.bf16.gmra.mxu0 %v219
    %v325 = vpop.f32.mrf.mxu0
    %v326 = vadd.f32 %v241, %v325
    %v327 = vpop.f32.mrf.mxu0
    %v328 = vpop.f32.mrf.mxu0
    %v329 = vadd.f32 %v241, %v328
    %v330 = vpop.f32.mrf.mxu0
    %331 = vdwg.mxu0
    %v332 = vpack.c.bf16 %v329, %v326
    %v333 = vld [vmem:[#allocation8] sm:$0xf]
    %v334 = vld [vmem:[#allocation8 + $0x4] sm:$0xf]
    %v335 = vld [vmem:[#allocation8 + $0x8] sm:$0xf]
    %v336 = vld [vmem:[#allocation8 + $0xc] sm:$0xf]
    %v337 = vld [vmem:[#allocation8 + $0x10] sm:$0xf]
    %v338 = vld [vmem:[#allocation8 + $0x14] sm:$0xf]
    %v339 = vld [vmem:[#allocation8 + $0x18] sm:$0xf]
    %v340 = vld [vmem:[#allocation8 + $0x1c] sm:$0xf]
    %v341 = vld [vmem:[#allocation8 + $0x20] sm:$0xf]
    %v342 = vld [vmem:[#allocation8 + $0x24] sm:$0xf]
    %v343 = vld [vmem:[#allocation8 + $0x28] sm:$0xf]
    %v344 = vld [vmem:[#allocation8 + $0x2c] sm:$0xf]
    %v345 = vld [vmem:[#allocation8 + $0x30] sm:$0xf]
    %v346 = vld [vmem:[#allocation8 + $0x34] sm:$0xf]
    %v347 = vld [vmem:[#allocation8 + $0x38] sm:$0xf]
    %v348 = vld [vmem:[#allocation8 + $0x3c] sm:$0xf]
    %v349 = vld [vmem:[%s6] sm:$0x1]
    %v351 = vlaneseq
    %v352 = vshrl.u32 %v351, 7
    %v353 = vsub.s32 0, %v352
    %v354 = vrot.slane %v349, %v353
    %v372 = vunpack.c.l.b16 %v333
    %v373 = vunpack.c.l.b16 %v334
    %v374 = vunpack.c.l.b16 %v335
    %v375 = vunpack.c.l.b16 %v336
    %v376 = vunpack.c.l.b16 %v337
    %v377 = vunpack.c.l.b16 %v338
    %v378 = vunpack.c.l.b16 %v339
    %v379 = vunpack.c.l.b16 %v340
    %v380 = vunpack.c.l.b16 %v341
    %v381 = vunpack.c.l.b16 %v342
    %v382 = vunpack.c.l.b16 %v343
    %v383 = vunpack.c.l.b16 %v344
    %v384 = vunpack.c.l.b16 %v345
    %v385 = vunpack.c.l.b16 %v346
    %v386 = vunpack.c.l.b16 %v347
    %v387 = vunpack.c.l.b16 %v348
    %v388 = vpack.c.b16 %v373, %v372
    %v389 = vpack.c.b16 %v375, %v374
    %v390 = vpack.c.b16 %v377, %v376
    %v391 = vpack.c.b16 %v379, %v378
    %v392 = vpack.c.b16 %v381, %v380
    %v393 = vpack.c.b16 %v383, %v382
    %v394 = vpack.c.b16 %v385, %v384
    %v395 = vpack.c.b16 %v387, %v386
    %404 = vmatprep.subr.bf16.mxu0 0
    %405 = vmatpush1.bf16.msra.mxu0 %v395
    %406 = vmatprep.subr.bf16.mxu0 0
    %407 = vmatpush1.bf16.msra.mxu0 %v394
    %408 = vmatprep.subr.bf16.mxu0 0
    %409 = vmatpush1.bf16.msra.mxu0 %v393
    %410 = vmatprep.subr.bf16.mxu0 0
    %411 = vmatpush1.bf16.msra.mxu0 %v392
    %412 = vmatprep.subr.bf16.mxu0 0
    %413 = vmatpush1.bf16.msra.mxu0 %v391
    %414 = vmatprep.subr.bf16.mxu0 0
    %415 = vmatpush1.bf16.msra.mxu0 %v390
    %416 = vmatprep.subr.bf16.mxu0 0
    %417 = vmatpush1.bf16.msra.mxu0 %v389
    %418 = vmatprep.subr.bf16.mxu0 0
    %419 = vmatpush1.bf16.msra.mxu0 %v388
    %420 = vmatprep.subr.bf16.mxu0 0
    %421 = vmatpush2.bf16.msra.mxu0 0
    %422 = vmatprep.subr.bf16.mxu0 0
    %423 = vmatpush2.bf16.msra.mxu0 0
    %424 = vmatprep.subr.bf16.mxu0 0
    %425 = vmatpush2.bf16.msra.mxu0 0
    %426 = vmatprep.subr.bf16.mxu0 0
    %427 = vmatpush2.bf16.msra.mxu0 0
    %428 = vmatprep.subr.bf16.mxu0 0
    %429 = vmatpush2.bf16.msra.mxu0 0
    %430 = vmatprep.subr.bf16.mxu0 0
    %431 = vmatpush2.bf16.msra.mxu0 0
    %432 = vmatprep.subr.bf16.mxu0 0
    %433 = vmatpush2.bf16.msra.mxu0 0
    %434 = vmatprep.subr.bf16.mxu0 0
    %435 = vmatpush2.bf16.msra.mxu0 0
    %436 = vmatprep.mubr.bf16.mxu0 0
    %437 = vmatmul.mubr.bf16.gmra.mxu0 %v332
    %v438 = vpop.f32.mrf.mxu0
    %v439 = vadd.f32 %v354, %v438
    %v440 = vpop.f32.mrf.mxu0
    %v441 = vpop.f32.mrf.mxu0
    %v442 = vadd.f32 %v354, %v441
    %v443 = vpop.f32.mrf.mxu0
    %444 = vdwg.mxu0
    %v445 = vpack.c.bf16 %v442, %v439
    %v446 = vld [vmem:[#allocation10] sm:$0xf]
    %v447 = vld [vmem:[#allocation10 + $0x4] sm:$0xf]
    %v448 = vld [vmem:[#allocation10 + $0x8] sm:$0xf]
    %v449 = vld [vmem:[#allocation10 + $0xc] sm:$0xf]
    %v450 = vld [vmem:[#allocation10 + $0x10] sm:$0xf]
    %v451 = vld [vmem:[#allocation10 + $0x14] sm:$0xf]
    %v452 = vld [vmem:[#allocation10 + $0x18] sm:$0xf]
    %v453 = vld [vmem:[#allocation10 + $0x1c] sm:$0xf]
    %v454 = vld [vmem:[#allocation10 + $0x20] sm:$0xf]
    %v455 = vld [vmem:[#allocation10 + $0x24] sm:$0xf]
    %v456 = vld [vmem:[#allocation10 + $0x28] sm:$0xf]
    %v457 = vld [vmem:[#allocation10 + $0x2c] sm:$0xf]
    %v458 = vld [vmem:[#allocation10 + $0x30] sm:$0xf]
    %v459 = vld [vmem:[#allocation10 + $0x34] sm:$0xf]
    %v460 = vld [vmem:[#allocation10 + $0x38] sm:$0xf]
    %v461 = vld [vmem:[#allocation10 + $0x3c] sm:$0xf]
    %v462 = vld [vmem:[%s8] sm:$0x1]
    %v464 = vlaneseq
    %v465 = vshrl.u32 %v464, 7
    %v466 = vsub.s32 0, %v465
    %v467 = vrot.slane %v462, %v466
    %v485 = vunpack.c.l.b16 %v446
    %v486 = vunpack.c.l.b16 %v447
    %v487 = vunpack.c.l.b16 %v448
    %v488 = vunpack.c.l.b16 %v449
    %v489 = vunpack.c.l.b16 %v450
    %v490 = vunpack.c.l.b16 %v451
    %v491 = vunpack.c.l.b16 %v452
    %v492 = vunpack.c.l.b16 %v453
    %v493 = vunpack.c.l.b16 %v454
    %v494 = vunpack.c.l.b16 %v455
    %v495 = vunpack.c.l.b16 %v456
    %v496 = vunpack.c.l.b16 %v457
    %v497 = vunpack.c.l.b16 %v458
    %v498 = vunpack.c.l.b16 %v459
    %v499 = vunpack.c.l.b16 %v460
    %v500 = vunpack.c.l.b16 %v461
    %v501 = vpack.c.b16 %v486, %v485
    %v502 = vpack.c.b16 %v488, %v487
    %v503 = vpack.c.b16 %v490, %v489
    %v504 = vpack.c.b16 %v492, %v491
    %v505 = vpack.c.b16 %v494, %v493
    %v506 = vpack.c.b16 %v496, %v495
    %v507 = vpack.c.b16 %v498, %v497
    %v508 = vpack.c.b16 %v500, %v499
    %517 = vmatprep.subr.bf16.mxu0 0
    %518 = vmatpush1.bf16.msra.mxu0 %v508
    %519 = vmatprep.subr.bf16.mxu0 0
    %520 = vmatpush1.bf16.msra.mxu0 %v507
    %521 = vmatprep.subr.bf16.mxu0 0
    %522 = vmatpush1.bf16.msra.mxu0 %v506
    %523 = vmatprep.subr.bf16.mxu0 0
    %524 = vmatpush1.bf16.msra.mxu0 %v505
    %525 = vmatprep.subr.bf16.mxu0 0
    %526 = vmatpush1.bf16.msra.mxu0 %v504
    %527 = vmatprep.subr.bf16.mxu0 0
    %528 = vmatpush1.bf16.msra.mxu0 %v503
    %529 = vmatprep.subr.bf16.mxu0 0
    %530 = vmatpush1.bf16.msra.mxu0 %v502
    %531 = vmatprep.subr.bf16.mxu0 0
    %532 = vmatpush1.bf16.msra.mxu0 %v501
    %533 = vmatprep.subr.bf16.mxu0 0
    %534 = vmatpush2.bf16.msra.mxu0 0
    %535 = vmatprep.subr.bf16.mxu0 0
    %536 = vmatpush2.bf16.msra.mxu0 0
    %537 = vmatprep.subr.bf16.mxu0 0
    %538 = vmatpush2.bf16.msra.mxu0 0
    %539 = vmatprep.subr.bf16.mxu0 0
    %540 = vmatpush2.bf16.msra.mxu0 0
    %541 = vmatprep.subr.bf16.mxu0 0
    %542 = vmatpush2.bf16.msra.mxu0 0
    %543 = vmatprep.subr.bf16.mxu0 0
    %544 = vmatpush2.bf16.msra.mxu0 0
    %545 = vmatprep.subr.bf16.mxu0 0
    %546 = vmatpush2.bf16.msra.mxu0 0
    %547 = vmatprep.subr.bf16.mxu0 0
    %548 = vmatpush2.bf16.msra.mxu0 0
    %549 = vmatprep.mubr.bf16.mxu0 0
    %550 = vmatmul.mubr.bf16.gmra.mxu0 %v445
    %v551 = vpop.f32.mrf.mxu0
    %v552 = vadd.f32 %v467, %v551
    %v553 = vpop.f32.mrf.mxu0
    %v554 = vpop.f32.mrf.mxu0
    %v555 = vadd.f32 %v467, %v554
    %v556 = vpop.f32.mrf.mxu0
    %557 = vdwg.mxu0
    %558 = vst [vmem:[#allocation11] sm:$0xff] %v552
    %559 = vst [vmem:[#allocation11 + $0x8] sm:$0xff] %v555
    // Predicated region
    $region58: #{tpu_custom_call.1} parent=1 // pred_check
      _
    $region59: #{tpu_custom_call.1} parent=1 // pred_check_branch
      %561 = sbr.rel (0) target = $region61
    $region60: #{tpu_custom_call.1} parent=1 // pred_region
      %s563 = ssub.s32 256, 256
      %564 = vsyncadd [#allocation4], %s563
      %s565 = sshll.u32 [#allocation11], 4
      %s566 = int_to_ptr.vmem [resolvable:$true] %s565
      %571 = dma.vmem_to_hbm [thread:$0]  %s566, 256, %s9, [#allocation4], 128, 128, 8
    $region61: #{tpu_custom_call.1} parent=1 // pred_fallthru
      _
    // Predicated region
    $region62: #{tpu_custom_call.1} parent=1 // pred_check
      _
    $region63: #{tpu_custom_call.1} parent=1 // pred_check_branch
      %573 = sbr.rel (0) target = $region65
    $region64: #{tpu_custom_call.1} parent=1 // pred_region
      %574 = dma.done [#allocation4], 256
    $region65: #{tpu_custom_call.1} parent=1 // pred_fallthru
      _
    %575 = vsyncpa [#allocation3], 1
    %576 = vsyncpa [#allocation6], 1
    %577 = vsyncpa [#allocation9], 1
    %578 = vsyncpa [#allocation4], 1

</llo_original>
